<compile_context>
chip_gen: v5e
topology: v5e:2x2
jax: 0.10.0
libtpu: 0.0.40
codegen_flags: <defaults>
</compile_context>

<pallas_src>
import math
import numpy as np
import jax
import jax.numpy as jnp
from jax.experimental import pallas as pl
from jax.experimental.pallas import tpu as pltpu

# ----------------------------------------------------------------------------
# Config (mirrors YOLOlloss.__init__).
# TODO(synk): giou/balance/box_ratio/obj_ratio/cls_ratio are not defined in the
#             provided __init__; standard yolov3 defaults are used.
# ----------------------------------------------------------------------------
ANCHORS = [(10, 13), (16, 30), (33, 23), (30, 61), (62, 45), (59, 119),
           (116, 90), (156, 198), (373, 326)]
NUM_CLASSES = 3
INPUT_SHAPE = (128, 128)
ANCHORS_MASK = [[6, 7, 8], [3, 4, 5], [0, 1, 2]]
IGNORE_THRESHOLD = 0.7
BBOX_ATTRS = 5 + NUM_CLASSES

BALANCE = [0.4, 1.0, 4.0]
BOX_RATIO = 0.05
OBJ_RATIO = 5.0 * (INPUT_SHAPE[0] * INPUT_SHAPE[1]) / (416.0 ** 2)
CLS_RATIO = 1.0 * (NUM_CLASSES / 80.0)


# ----------------------------------------------------------------------------
# Host-side glue: get_target (exact port of the PyTorch reference).
# ----------------------------------------------------------------------------
def calculate_iou_np(box_a, box_b):
    b1_x1, b1_x2 = box_a[:, 0] - box_a[:, 2] / 2, box_a[:, 0] + box_a[:, 2] / 2
    b1_y1, b1_y2 = box_a[:, 1] - box_a[:, 3] / 2, box_a[:, 1] + box_a[:, 3] / 2
    b2_x1, b2_x2 = box_b[:, 0] - box_b[:, 2] / 2, box_b[:, 0] + box_b[:, 2] / 2
    b2_y1, b2_y2 = box_b[:, 1] - box_b[:, 3] / 2, box_b[:, 1] + box_b[:, 3] / 2
    ba = np.stack([b1_x1, b1_y1, b1_x2, b1_y2], 1)
    bb = np.stack([b2_x1, b2_y1, b2_x2, b2_y2], 1)
    max_xy = np.minimum(ba[:, None, 2:], bb[None, :, 2:])
    min_xy = np.maximum(ba[:, None, :2], bb[None, :, :2])
    inter = np.clip(max_xy - min_xy, 0.0, None)
    inter = inter[:, :, 0] * inter[:, :, 1]
    area_a = ((ba[:, 2] - ba[:, 0]) * (ba[:, 3] - ba[:, 1]))[:, None]
    area_b = ((bb[:, 2] - bb[:, 0]) * (bb[:, 3] - bb[:, 1]))[None, :]
    union = area_a + area_b - inter
    return inter / union


def get_target_np(L, targets, scaled_anchors, in_h, in_w):
    bs = len(targets)
    A = len(ANCHORS_MASK[L])
    box_loss_scale = np.zeros((bs, A, in_h, in_w), np.float32)
    y_true = np.zeros((bs, A, in_h, in_w, BBOX_ATTRS), np.float32)
    anchor_shapes = np.concatenate(
        [np.zeros((len(scaled_anchors), 2), np.float32),
         np.array(scaled_anchors, np.float32)], axis=1)
    for b in range(bs):
        if len(targets[b]) == 0:
            continue
        bt = np.zeros_like(targets[b])
        bt[:, [0, 2]] = targets[b][:, [0, 2]] * in_w
        bt[:, [1, 3]] = targets[b][:, [1, 3]] * in_h
        bt[:, 4] = targets[b][:, 4]
        gt_box = np.concatenate(
            [np.zeros((bt.shape[0], 2), np.float32), bt[:, 2:4]], 1)
        best_ns = np.argmax(calculate_iou_np(gt_box, anchor_shapes), axis=-1)
        for t, best_n in enumerate(best_ns):
            if best_n not in ANCHORS_MASK[L]:
                continue
            k = ANCHORS_MASK[L].index(best_n)
            i = int(np.floor(bt[t, 0]))
            j = int(np.floor(bt[t, 1]))
            c = int(bt[t, 4])
            # noobj_mask is NOT built here: it equals 1 - y_true[..., 4] exactly
            # (zeroed at precisely the assigned cells) and is recomputed in-kernel.
            y_true[b, k, j, i, 0] = bt[t, 0] - i
            y_true[b, k, j, i, 1] = bt[t, 1] - j
            y_true[b, k, j, i, 2] = math.log(bt[t, 2] / scaled_anchors[best_n][0])
            y_true[b, k, j, i, 3] = math.log(bt[t, 3] / scaled_anchors[best_n][1])
            y_true[b, k, j, i, 4] = 1.0
            y_true[b, k, j, i, c + 5] = 1.0
            box_loss_scale[b, k, j, i] = bt[t, 2] * bt[t, 3] / in_w / in_h
    return y_true, box_loss_scale


# ----------------------------------------------------------------------------
# Pallas kernel: per (batch, anchor) slab; dense (Rhw, 128) vreg math; output
# reduced in-kernel to a single lane-dense (8, 128) block.
# ----------------------------------------------------------------------------
def make_yolo_kernel(num_classes, hw, w_grid, anchor_wh, n_targets, n_rows):
    (aw0, ah0), (aw1, ah1), (aw2, ah2) = [tuple(map(float, a)) for a in anchor_wh]
    HW = float(hw)
    W = float(w_grid)
    THR = float(IGNORE_THRESHOLD)
    T4 = 4 * n_targets

    def bce_logits(z, t):
        # Stable BCE-with-logits == BCE(sigmoid(z), t) (no eps clipping needed).
        return jnp.maximum(z, 0.0) - z * t + jnp.log(1.0 + jnp.exp(-jnp.abs(z)))

    def kernel(gt_ref, pred_ref, yt_ref, bls_ref, out_ref):
        b = pl.program_id(0)
        a = pl.program_id(1)

        x_raw = pred_ref[0]
        y_raw = pred_ref[1]
        w_raw = pred_ref[2]
        h_raw = pred_ref[3]
        conf_raw = pred_ref[4]

        tx = yt_ref[0].astype(jnp.float32)
        ty = yt_ref[1].astype(jnp.float32)
        tw = yt_ref[2].astype(jnp.float32)
        th = yt_ref[3].astype(jnp.float32)
        obj_f = yt_ref[4].astype(jnp.float32)          # exact 0/1 one-hot in bf16
        obj = obj_f == 1.0

        bls2 = 2.0 - bls_ref[...].astype(jnp.float32)  # box_loss_scale = 2 - bls

        row_x = obj_f * bce_logits(x_raw, tx) * bls2
        row_y = obj_f * bce_logits(y_raw, ty) * bls2
        row_w = obj_f * jnp.square(tw - w_raw) * bls2  # MSE on raw w/h
        row_h = obj_f * jnp.square(th - h_raw) * bls2

        cls_sum = bce_logits(pred_ref[5], yt_ref[5].astype(jnp.float32))
        for c in range(1, num_classes):
            cls_sum = cls_sum + bce_logits(pred_ref[5 + c],
                                           yt_ref[5 + c].astype(jnp.float32))
        row_cls = obj_f * cls_sum

        # ---- get_ignore: decode pred boxes for this anchor, IoU vs GT boxes ----
        rows = jax.lax.broadcasted_iota(jnp.int32, (n_rows, 128), 0).astype(jnp.float32)
        lanes = jax.lax.broadcasted_iota(jnp.int32, (n_rows, 128), 1).astype(jnp.float32)
        n = rows * 128.0 + lanes                       # linear cell idx within H*W
        valid = n < HW                                 # padded lanes excluded below
        gy = jnp.floor((n + 0.5) / W)                  # exact for H*W < 2^23
        gx = n - gy * W

        aw = jnp.where(a == 0, aw0, jnp.where(a == 1, aw1, aw2))
        ah = jnp.where(a == 0, ah0, jnp.where(a == 1, ah1, ah2))

        px = jax.nn.sigmoid(x_raw) + gx
        py = jax.nn.sigmoid(y_raw) + gy
        # clamp logits before exp: cheap insurance against inf - inf = NaN in IoU
        pw = jnp.exp(jnp.minimum(w_raw, 20.0)) * aw
        ph = jnp.exp(jnp.minimum(h_raw, 20.0)) * ah
        px1 = px - 0.5 * pw
        px2 = px + 0.5 * pw
        py1 = py - 0.5 * ph
        py2 = py + 0.5 * ph
        thr_area_p = THR * (pw * ph)                   # hoisted out of target loop

        base = b * T4
        ignore = jnp.zeros_like(obj)
        for t in range(n_targets):                     # GT boxes from flat SMEM table
            bx1 = gt_ref[base + 0 * n_targets + t]
            by1 = gt_ref[base + 1 * n_targets + t]
            bx2 = gt_ref[base + 2 * n_targets + t]
            by2 = gt_ref[base + 3 * n_targets + t]
            thr_area_t = THR * (bx2 - bx1) * (by2 - by1)
            iw = jnp.maximum(jnp.minimum(px2, bx2) - jnp.maximum(px1, bx1), 0.0)
            ih = jnp.maximum(jnp.minimum(py2, by2) - jnp.maximum(py1, by1), 0.0)
            inter = iw * ih
            # iou > THR  <=>  inter*(1+THR) > THR*(area_p + area_t)   (union > 0)
            ignore = jnp.logical_or(ignore,
                                    inter * (1.0 + THR) > thr_area_p + thr_area_t)

        # noobj == 1 - obj after get_target; ignore + padded-lane mask applied here.
        noobj = jnp.logical_and(valid,
                                jnp.logical_and(jnp.logical_not(obj),
                                                jnp.logical_not(ignore)))
        conf_mask = jnp.logical_or(noobj, obj).astype(jnp.float32)
        row_conf = conf_mask * bce_logits(conf_raw, obj_f)

        # ---- in-kernel sublane reduction: one lane-dense (8,128) store ----
        out_ref[...] = jnp.concatenate(
            [jnp.sum(row_x, axis=0, keepdims=True),
             jnp.sum(row_y, axis=0, keepdims=True),
             jnp.sum(row_w, axis=0, keepdims=True),
             jnp.sum(row_h, axis=0, keepdims=True),
             jnp.sum(row_cls, axis=0, keepdims=True),
             jnp.sum(obj_f, axis=0, keepdims=True),
             jnp.sum(row_conf, axis=0, keepdims=True),
             jnp.sum(conf_mask, axis=0, keepdims=True)], axis=0)

    return kernel


# ----------------------------------------------------------------------------
# Wrapper: layout conversion, target prep, pallas_call, loss finalization.
# ----------------------------------------------------------------------------
def yolo_loss(L, x_nchw, targets_list):
    B, _, in_h, in_w = x_nchw.shape
    A = len(ANCHORS_MASK[L])
    C = BBOX_ATTRS
    stride_h = INPUT_SHAPE[0] / in_h
    stride_w = INPUT_SHAPE[1] / in_w
    scaled_anchors = [(aw / stride_w, ah / stride_h) for aw, ah in ANCHORS]
    anchor_wh = [scaled_anchors[m] for m in ANCHORS_MASK[L]]

    # ---- get_target (host-side numpy, exact port of the reference) ----
    y_true, bls = get_target_np(L, targets_list, scaled_anchors, in_h, in_w)

    HW = in_h * in_w
    assert A * HW < (1 << 23), "float cell-index decode requires A*H*W < 2^23"
    Rhw = -(-HW // 128)             # ceil(HW / 128)
    Npad = Rhw * 128
    pad = Npad - HW

    # pred: pure reshape + lane-pad of the NCHW head output (NO transpose copy).
    pred = x_nchw.reshape(B, A, C, HW)
    pred = jnp.pad(pred, ((0, 0), (0, 0), (0, 0), (0, pad))).reshape(B, A, C, Rhw, 128)
    # TODO(synk): pred could also be fed as bf16 if the head tolerates it (-22% bytes).

    # y_true / box_loss_scale: host numpy relayout (cheap), device side as bf16.
    yt = np.transpose(y_true, (0, 1, 4, 2, 3)).reshape(B, A, C, HW)
    yt = np.pad(yt, ((0, 0), (0, 0), (0, 0), (0, pad))).reshape(B, A, C, Rhw, 128)
    bl = np.pad(bls.reshape(B, A, HW), ((0, 0), (0, 0), (0, pad))).reshape(B, A, Rhw, 128)
    yt_bf = jnp.asarray(yt).astype(jnp.bfloat16)
    bl_bf = jnp.asarray(bl).astype(jnp.bfloat16)

    # GT corner boxes in grid units; flat 1-D scalar table (SMEM prefetch, no 2-D pad).
    T = max((len(t) for t in targets_list), default=0)
    Tp = max(T, 1)                                      # guard the no-target case
    gt = np.zeros((B * 4 * Tp,), np.float32)            # zero boxes never trigger ignore
    for bi, tb in enumerate(targets_list):
        base = bi * 4 * Tp
        for t in range(len(tb)):
            cx, cy = tb[t, 0] * in_w, tb[t, 1] * in_h
            w, h = tb[t, 2] * in_w, tb[t, 3] * in_h
            gt[base + 0 * Tp + t] = cx - 0.5 * w
            gt[base + 1 * Tp + t] = cy - 0.5 * h
            gt[base + 2 * Tp + t] = cx + 0.5 * w
            gt[base + 3 * Tp + t] = cy + 0.5 * h

    kernel = make_yolo_kernel(NUM_CLASSES, float(HW), float(in_w), anchor_wh, Tp, Rhw)

    cells = B * A * Npad
    cost = pl.CostEstimate(
        flops=int(cells * (100 + 13 * Tp)),
        transcendentals=int(cells * 16),
        bytes_accessed=int(cells * (4 * C + 2 * C + 2) + B * A * 8 * 128 * 4),
    )

    partials = pl.pallas_call(
        kernel,
        out_shape=jax.ShapeDtypeStruct((B, A, 8, 128), jnp.float32),
        grid_spec=pltpu.PrefetchScalarGridSpec(
            num_scalar_prefetch=1,
            grid=(B, A),
            in_specs=[
                pl.BlockSpec((None, None, C, Rhw, 128),
                             lambda b, a, gt: (b, a, 0, 0, 0)),   # pred (f32)
                pl.BlockSpec((None, None, C, Rhw, 128),
                             lambda b, a, gt: (b, a, 0, 0, 0)),   # y_true (bf16)
                pl.BlockSpec((None, None, Rhw, 128),
                             lambda b, a, gt: (b, a, 0, 0)),      # bls (bf16)
            ],
            out_specs=pl.BlockSpec((None, None, 8, 128),
                                   lambda b, a, gt: (b, a, 0, 0)),
        ),
        compiler_params=pltpu.CompilerParams(
            dimension_semantics=("parallel", "parallel")),  # disjoint (b,a) blocks
        cost_estimate=cost,
    )(jnp.asarray(gt), pred, yt_bf, bl_bf)

    s = jnp.sum(partials, axis=(0, 1, 3))                # (8,)
    s_x, s_y, s_w, s_h = s[0], s[1], s[2], s[3]
    s_cls, n_obj, s_conf, cnt_conf = s[4], s[5], s[6], s[7]

    n_safe = jnp.maximum(n_obj, 1.0)
    loss_x = s_x / n_safe
    loss_y = s_y / n_safe
    loss_w = s_w / n_safe
    loss_h = s_h / n_safe
    loss_loc = (loss_x + loss_y + loss_h + loss_w) * 0.1
    loss_cls = s_cls / (n_safe * NUM_CLASSES)
    loss_conf = s_conf / jnp.maximum(cnt_conf, 1.0)

    loss = jnp.where(n_obj > 0,
                     loss_loc * BOX_RATIO + loss_cls * CLS_RATIO,
                     0.0)
    loss = loss + loss_conf * BALANCE[L] * OBJ_RATIO
    return loss


if __name__ == "__main__":
    key = jax.random.PRNGKey(0)
    B, in_h, in_w = 2, 16, 16
    L = 0
    A = len(ANCHORS_MASK[L])

    # raw yolo head output, NCHW: (B, A*(5+num_classes), H, W)
    x = jax.random.normal(key, (B, A * BBOX_ATTRS, in_h, in_w), jnp.float32) * 0.5

    # targets: per-batch (T, 5) boxes [cx, cy, w, h, class], normalized to [0,1]
    targets = [
        np.array([[0.50, 0.50, 0.70, 0.60, 1.0],
                  [0.60, 0.35, 0.30, 0.40, 0.0]], np.float32),
        np.array([[0.30, 0.70, 0.80, 0.75, 2.0],
                  [0.25, 0.25, 0.65, 0.55, 0.0]], np.float32),
    ]

    loss = yolo_loss(L, x, targets)
    loss = jax.block_until_ready(loss)
    assert bool(jnp.isfinite(loss)), "loss is not finite"
    print("KERNEL_OK")
</pallas_src>

<mosaic_0001>
module attributes {stable_mosaic.version = 11 : i64} {
  func.func @kernel(%arg0: i32, %arg1: i32, %arg2: memref<16xf32, #tpu.memory_space<smem>>, %arg3: memref<1x1x8x2x128xf32, #tpu.memory_space<vmem>>, %arg4: memref<1x1x8x2x128xbf16, #tpu.memory_space<vmem>>, %arg5: memref<1x1x2x128xbf16, #tpu.memory_space<vmem>>, %arg6: memref<1x1x8x128xf32, #tpu.memory_space<vmem>>) attributes {dimension_semantics = [#tpu.dimension_semantics<parallel>, #tpu.dimension_semantics<parallel>], iteration_bounds = array<i64: 2, 3>, scalar_prefetch = 1 : i64, scratch_operands = 0 : i64, tpu.core_type = #tpu.core_type<tc>, window_params = [{transform_indices = @transform_0, window_bounds = array<i64: 1, 1, 8, 2, 128>}, {transform_indices = @transform_1, window_bounds = array<i64: 1, 1, 8, 2, 128>}, {transform_indices = @transform_2, window_bounds = array<i64: 1, 1, 2, 128>}, {transform_indices = @transform_3, window_bounds = array<i64: 1, 1, 8, 128>}]} {
    %c0 = arith.constant 0 : index
    %c0_0 = arith.constant 0 : index
    %c0_1 = arith.constant 0 : index
    %c0_2 = arith.constant 0 : index
    %c0_3 = arith.constant 0 : index
    %0 = vector.load %arg3[%c0, %c0_0, %c0_1, %c0_2, %c0_3] : memref<1x1x8x2x128xf32, #tpu.memory_space<vmem>>, vector<1x1x1x2x128xf32>
    %1 = vector.shape_cast %0 : vector<1x1x1x2x128xf32> to vector<2x128xf32>
    %c0_4 = arith.constant 0 : index
    %c0_5 = arith.constant 0 : index
    %c1 = arith.constant 1 : index
    %c0_6 = arith.constant 0 : index
    %c0_7 = arith.constant 0 : index
    %2 = vector.load %arg3[%c0_4, %c0_5, %c1, %c0_6, %c0_7] : memref<1x1x8x2x128xf32, #tpu.memory_space<vmem>>, vector<1x1x1x2x128xf32>
    %3 = vector.shape_cast %2 : vector<1x1x1x2x128xf32> to vector<2x128xf32>
    %c0_8 = arith.constant 0 : index
    %c0_9 = arith.constant 0 : index
    %c2 = arith.constant 2 : index
    %c0_10 = arith.constant 0 : index
    %c0_11 = arith.constant 0 : index
    %4 = vector.load %arg3[%c0_8, %c0_9, %c2, %c0_10, %c0_11] : memref<1x1x8x2x128xf32, #tpu.memory_space<vmem>>, vector<1x1x1x2x128xf32>
    %5 = vector.shape_cast %4 : vector<1x1x1x2x128xf32> to vector<2x128xf32>
    %c0_12 = arith.constant 0 : index
    %c0_13 = arith.constant 0 : index
    %c3 = arith.constant 3 : index
    %c0_14 = arith.constant 0 : index
    %c0_15 = arith.constant 0 : index
    %6 = vector.load %arg3[%c0_12, %c0_13, %c3, %c0_14, %c0_15] : memref<1x1x8x2x128xf32, #tpu.memory_space<vmem>>, vector<1x1x1x2x128xf32>
    %7 = vector.shape_cast %6 : vector<1x1x1x2x128xf32> to vector<2x128xf32>
    %c0_16 = arith.constant 0 : index
    %c0_17 = arith.constant 0 : index
    %c4 = arith.constant 4 : index
    %c0_18 = arith.constant 0 : index
    %c0_19 = arith.constant 0 : index
    %8 = vector.load %arg3[%c0_16, %c0_17, %c4, %c0_18, %c0_19] : memref<1x1x8x2x128xf32, #tpu.memory_space<vmem>>, vector<1x1x1x2x128xf32>
    %9 = vector.shape_cast %8 : vector<1x1x1x2x128xf32> to vector<2x128xf32>
    %c0_20 = arith.constant 0 : index
    %c0_21 = arith.constant 0 : index
    %c0_22 = arith.constant 0 : index
    %c0_23 = arith.constant 0 : index
    %c0_24 = arith.constant 0 : index
    %10 = vector.load %arg4[%c0_20, %c0_21, %c0_22, %c0_23, %c0_24] : memref<1x1x8x2x128xbf16, #tpu.memory_space<vmem>>, vector<1x1x1x2x128xbf16>
    %11 = vector.shape_cast %10 : vector<1x1x1x2x128xbf16> to vector<2x128xbf16>
    %12 = arith.extf %11 : vector<2x128xbf16> to vector<2x128xf32>
    %c0_25 = arith.constant 0 : index
    %c0_26 = arith.constant 0 : index
    %c1_27 = arith.constant 1 : index
    %c0_28 = arith.constant 0 : index
    %c0_29 = arith.constant 0 : index
    %13 = vector.load %arg4[%c0_25, %c0_26, %c1_27, %c0_28, %c0_29] : memref<1x1x8x2x128xbf16, #tpu.memory_space<vmem>>, vector<1x1x1x2x128xbf16>
    %14 = vector.shape_cast %13 : vector<1x1x1x2x128xbf16> to vector<2x128xbf16>
    %15 = arith.extf %14 : vector<2x128xbf16> to vector<2x128xf32>
    %c0_30 = arith.constant 0 : index
    %c0_31 = arith.constant 0 : index
    %c2_32 = arith.constant 2 : index
    %c0_33 = arith.constant 0 : index
    %c0_34 = arith.constant 0 : index
    %16 = vector.load %arg4[%c0_30, %c0_31, %c2_32, %c0_33, %c0_34] : memref<1x1x8x2x128xbf16, #tpu.memory_space<vmem>>, vector<1x1x1x2x128xbf16>
    %17 = vector.shape_cast %16 : vector<1x1x1x2x128xbf16> to vector<2x128xbf16>
    %18 = arith.extf %17 : vector<2x128xbf16> to vector<2x128xf32>
    %c0_35 = arith.constant 0 : index
    %c0_36 = arith.constant 0 : index
    %c3_37 = arith.constant 3 : index
    %c0_38 = arith.constant 0 : index
    %c0_39 = arith.constant 0 : index
    %19 = vector.load %arg4[%c0_35, %c0_36, %c3_37, %c0_38, %c0_39] : memref<1x1x8x2x128xbf16, #tpu.memory_space<vmem>>, vector<1x1x1x2x128xbf16>
    %20 = vector.shape_cast %19 : vector<1x1x1x2x128xbf16> to vector<2x128xbf16>
    %21 = arith.extf %20 : vector<2x128xbf16> to vector<2x128xf32>
    %c0_40 = arith.constant 0 : index
    %c0_41 = arith.constant 0 : index
    %c4_42 = arith.constant 4 : index
    %c0_43 = arith.constant 0 : index
    %c0_44 = arith.constant 0 : index
    %22 = vector.load %arg4[%c0_40, %c0_41, %c4_42, %c0_43, %c0_44] : memref<1x1x8x2x128xbf16, #tpu.memory_space<vmem>>, vector<1x1x1x2x128xbf16>
    %23 = vector.shape_cast %22 : vector<1x1x1x2x128xbf16> to vector<2x128xbf16>
    %24 = arith.extf %23 : vector<2x128xbf16> to vector<2x128xf32>
    %cst = arith.constant 1.000000e+00 : f32
    %25 = vector.broadcast %cst : f32 to vector<2x128xf32>
    %26 = arith.cmpf oeq, %24, %25 : vector<2x128xf32>
    %c0_45 = arith.constant 0 : index
    %c0_46 = arith.constant 0 : index
    %c0_47 = arith.constant 0 : index
    %c0_48 = arith.constant 0 : index
    %27 = vector.load %arg5[%c0_45, %c0_46, %c0_47, %c0_48] : memref<1x1x2x128xbf16, #tpu.memory_space<vmem>>, vector<1x1x2x128xbf16>
    %28 = vector.shape_cast %27 : vector<1x1x2x128xbf16> to vector<2x128xbf16>
    %29 = arith.extf %28 : vector<2x128xbf16> to vector<2x128xf32>
    %cst_49 = arith.constant 2.000000e+00 : f32
    %30 = vector.broadcast %cst_49 : f32 to vector<2x128xf32>
    %31 = arith.subf %30, %29 : vector<2x128xf32>
    %cst_50 = arith.constant 0.000000e+00 : f32
    %32 = vector.broadcast %cst_50 : f32 to vector<2x128xf32>
    %33 = arith.maximumf %1, %32 : vector<2x128xf32>
    %34 = arith.mulf %1, %12 : vector<2x128xf32>
    %35 = arith.subf %33, %34 : vector<2x128xf32>
    %36 = math.absf %1 : vector<2x128xf32>
    %cst_51 = arith.constant 0.000000e+00 : f32
    %37 = vector.broadcast %cst_51 : f32 to vector<2x128xf32>
    %38 = arith.subf %37, %36 : vector<2x128xf32>
    %39 = math.exp %38 : vector<2x128xf32>
    %cst_52 = arith.constant 1.000000e+00 : f32
    %40 = vector.broadcast %cst_52 : f32 to vector<2x128xf32>
    %41 = arith.addf %40, %39 : vector<2x128xf32>
    %42 = math.log %41 : vector<2x128xf32>
    %43 = arith.addf %35, %42 : vector<2x128xf32>
    %44 = arith.mulf %24, %43 : vector<2x128xf32>
    %45 = arith.mulf %44, %31 : vector<2x128xf32>
    %cst_53 = arith.constant 0.000000e+00 : f32
    %46 = vector.broadcast %cst_53 : f32 to vector<2x128xf32>
    %47 = arith.maximumf %3, %46 : vector<2x128xf32>
    %48 = arith.mulf %3, %15 : vector<2x128xf32>
    %49 = arith.subf %47, %48 : vector<2x128xf32>
    %50 = math.absf %3 : vector<2x128xf32>
    %cst_54 = arith.constant 0.000000e+00 : f32
    %51 = vector.broadcast %cst_54 : f32 to vector<2x128xf32>
    %52 = arith.subf %51, %50 : vector<2x128xf32>
    %53 = math.exp %52 : vector<2x128xf32>
    %cst_55 = arith.constant 1.000000e+00 : f32
    %54 = vector.broadcast %cst_55 : f32 to vector<2x128xf32>
    %55 = arith.addf %54, %53 : vector<2x128xf32>
    %56 = math.log %55 : vector<2x128xf32>
    %57 = arith.addf %49, %56 : vector<2x128xf32>
    %58 = arith.mulf %24, %57 : vector<2x128xf32>
    %59 = arith.mulf %58, %31 : vector<2x128xf32>
    %60 = arith.subf %18, %5 : vector<2x128xf32>
    %61 = arith.mulf %60, %60 : vector<2x128xf32>
    %62 = arith.mulf %24, %61 : vector<2x128xf32>
    %63 = arith.mulf %62, %31 : vector<2x128xf32>
    %64 = arith.subf %21, %7 : vector<2x128xf32>
    %65 = arith.mulf %64, %64 : vector<2x128xf32>
    %66 = arith.mulf %24, %65 : vector<2x128xf32>
    %67 = arith.mulf %66, %31 : vector<2x128xf32>
    %c0_56 = arith.constant 0 : index
    %c0_57 = arith.constant 0 : index
    %c5 = arith.constant 5 : index
    %c0_58 = arith.constant 0 : index
    %c0_59 = arith.constant 0 : index
    %68 = vector.load %arg3[%c0_56, %c0_57, %c5, %c0_58, %c0_59] : memref<1x1x8x2x128xf32, #tpu.memory_space<vmem>>, vector<1x1x1x2x128xf32>
    %69 = vector.shape_cast %68 : vector<1x1x1x2x128xf32> to vector<2x128xf32>
    %c0_60 = arith.constant 0 : index
    %c0_61 = arith.constant 0 : index
    %c5_62 = arith.constant 5 : index
    %c0_63 = arith.constant 0 : index
    %c0_64 = arith.constant 0 : index
    %70 = vector.load %arg4[%c0_60, %c0_61, %c5_62, %c0_63, %c0_64] : memref<1x1x8x2x128xbf16, #tpu.memory_space<vmem>>, vector<1x1x1x2x128xbf16>
    %71 = vector.shape_cast %70 : vector<1x1x1x2x128xbf16> to vector<2x128xbf16>
    %72 = arith.extf %71 : vector<2x128xbf16> to vector<2x128xf32>
    %cst_65 = arith.constant 0.000000e+00 : f32
    %73 = vector.broadcast %cst_65 : f32 to vector<2x128xf32>
    %74 = arith.maximumf %69, %73 : vector<2x128xf32>
    %75 = arith.mulf %69, %72 : vector<2x128xf32>
    %76 = arith.subf %74, %75 : vector<2x128xf32>
    %77 = math.absf %69 : vector<2x128xf32>
    %cst_66 = arith.constant 0.000000e+00 : f32
    %78 = vector.broadcast %cst_66 : f32 to vector<2x128xf32>
    %79 = arith.subf %78, %77 : vector<2x128xf32>
    %80 = math.exp %79 : vector<2x128xf32>
    %cst_67 = arith.constant 1.000000e+00 : f32
    %81 = vector.broadcast %cst_67 : f32 to vector<2x128xf32>
    %82 = arith.addf %81, %80 : vector<2x128xf32>
    %83 = math.log %82 : vector<2x128xf32>
    %84 = arith.addf %76, %83 : vector<2x128xf32>
    %c0_68 = arith.constant 0 : index
    %c0_69 = arith.constant 0 : index
    %c6 = arith.constant 6 : index
    %c0_70 = arith.constant 0 : index
    %c0_71 = arith.constant 0 : index
    %85 = vector.load %arg3[%c0_68, %c0_69, %c6, %c0_70, %c0_71] : memref<1x1x8x2x128xf32, #tpu.memory_space<vmem>>, vector<1x1x1x2x128xf32>
    %86 = vector.shape_cast %85 : vector<1x1x1x2x128xf32> to vector<2x128xf32>
    %c0_72 = arith.constant 0 : index
    %c0_73 = arith.constant 0 : index
    %c6_74 = arith.constant 6 : index
    %c0_75 = arith.constant 0 : index
    %c0_76 = arith.constant 0 : index
    %87 = vector.load %arg4[%c0_72, %c0_73, %c6_74, %c0_75, %c0_76] : memref<1x1x8x2x128xbf16, #tpu.memory_space<vmem>>, vector<1x1x1x2x128xbf16>
    %88 = vector.shape_cast %87 : vector<1x1x1x2x128xbf16> to vector<2x128xbf16>
    %89 = arith.extf %88 : vector<2x128xbf16> to vector<2x128xf32>
    %cst_77 = arith.constant 0.000000e+00 : f32
    %90 = vector.broadcast %cst_77 : f32 to vector<2x128xf32>
    %91 = arith.maximumf %86, %90 : vector<2x128xf32>
    %92 = arith.mulf %86, %89 : vector<2x128xf32>
    %93 = arith.subf %91, %92 : vector<2x128xf32>
    %94 = math.absf %86 : vector<2x128xf32>
    %cst_78 = arith.constant 0.000000e+00 : f32
    %95 = vector.broadcast %cst_78 : f32 to vector<2x128xf32>
    %96 = arith.subf %95, %94 : vector<2x128xf32>
    %97 = math.exp %96 : vector<2x128xf32>
    %cst_79 = arith.constant 1.000000e+00 : f32
    %98 = vector.broadcast %cst_79 : f32 to vector<2x128xf32>
    %99 = arith.addf %98, %97 : vector<2x128xf32>
    %100 = math.log %99 : vector<2x128xf32>
    %101 = arith.addf %93, %100 : vector<2x128xf32>
    %102 = arith.addf %84, %101 : vector<2x128xf32>
    %c0_80 = arith.constant 0 : index
    %c0_81 = arith.constant 0 : index
    %c7 = arith.constant 7 : index
    %c0_82 = arith.constant 0 : index
    %c0_83 = arith.constant 0 : index
    %103 = vector.load %arg3[%c0_80, %c0_81, %c7, %c0_82, %c0_83] : memref<1x1x8x2x128xf32, #tpu.memory_space<vmem>>, vector<1x1x1x2x128xf32>
    %104 = vector.shape_cast %103 : vector<1x1x1x2x128xf32> to vector<2x128xf32>
    %c0_84 = arith.constant 0 : index
    %c0_85 = arith.constant 0 : index
    %c7_86 = arith.constant 7 : index
    %c0_87 = arith.constant 0 : index
    %c0_88 = arith.constant 0 : index
    %105 = vector.load %arg4[%c0_84, %c0_85, %c7_86, %c0_87, %c0_88] : memref<1x1x8x2x128xbf16, #tpu.memory_space<vmem>>, vector<1x1x1x2x128xbf16>
    %106 = vector.shape_cast %105 : vector<1x1x1x2x128xbf16> to vector<2x128xbf16>
    %107 = arith.extf %106 : vector<2x128xbf16> to vector<2x128xf32>
    %cst_89 = arith.constant 0.000000e+00 : f32
    %108 = vector.broadcast %cst_89 : f32 to vector<2x128xf32>
    %109 = arith.maximumf %104, %108 : vector<2x128xf32>
    %110 = arith.mulf %104, %107 : vector<2x128xf32>
    %111 = arith.subf %109, %110 : vector<2x128xf32>
    %112 = math.absf %104 : vector<2x128xf32>
    %cst_90 = arith.constant 0.000000e+00 : f32
    %113 = vector.broadcast %cst_90 : f32 to vector<2x128xf32>
    %114 = arith.subf %113, %112 : vector<2x128xf32>
    %115 = math.exp %114 : vector<2x128xf32>
    %cst_91 = arith.constant 1.000000e+00 : f32
    %116 = vector.broadcast %cst_91 : f32 to vector<2x128xf32>
    %117 = arith.addf %116, %115 : vector<2x128xf32>
    %118 = math.log %117 : vector<2x128xf32>
    %119 = arith.addf %111, %118 : vector<2x128xf32>
    %120 = arith.addf %102, %119 : vector<2x128xf32>
    %121 = arith.mulf %24, %120 : vector<2x128xf32>
    %122 = tpu.iota {dimensions = array<i32: 0>} : vector<2x128xi32>
    %123 = arith.sitofp %122 : vector<2x128xi32> to vector<2x128xf32>
    %124 = tpu.iota {dimensions = array<i32: 1>} : vector<2x128xi32>
    %125 = arith.sitofp %124 : vector<2x128xi32> to vector<2x128xf32>
    %cst_92 = arith.constant 1.280000e+02 : f32
    %126 = vector.broadcast %cst_92 : f32 to vector<2x128xf32>
    %127 = arith.mulf %123, %126 : vector<2x128xf32>
    %128 = arith.addf %127, %125 : vector<2x128xf32>
    %cst_93 = arith.constant 2.560000e+02 : f32
    %129 = vector.broadcast %cst_93 : f32 to vector<2x128xf32>
    %130 = arith.cmpf olt, %128, %129 : vector<2x128xf32>
    %cst_94 = arith.constant 5.000000e-01 : f32
    %131 = vector.broadcast %cst_94 : f32 to vector<2x128xf32>
    %132 = arith.addf %128, %131 : vector<2x128xf32>
    %cst_95 = arith.constant 1.600000e+01 : f32
    %133 = vector.broadcast %cst_95 : f32 to vector<2x128xf32>
    %134 = arith.divf %132, %133 : vector<2x128xf32>
    %135 = math.floor %134 : vector<2x128xf32>
    %cst_96 = arith.constant 1.600000e+01 : f32
    %136 = vector.broadcast %cst_96 : f32 to vector<2x128xf32>
    %137 = arith.mulf %135, %136 : vector<2x128xf32>
    %138 = arith.subf %128, %137 : vector<2x128xf32>
    %c0_i32 = arith.constant 0 : i32
    %139 = arith.cmpi eq, %arg1, %c0_i32 : i32
    %c1_i32 = arith.constant 1 : i32
    %140 = arith.cmpi eq, %arg1, %c1_i32 : i32
    %cst_97 = arith.constant 1.950000e+01 : f32
    %cst_98 = arith.constant 4.662500e+01 : f32
    %141 = arith.select %140, %cst_97, %cst_98 : f32
    %cst_99 = arith.constant 1.450000e+01 : f32
    %142 = arith.select %139, %cst_99, %141 : f32
    %c0_i32_100 = arith.constant 0 : i32
    %143 = arith.cmpi eq, %arg1, %c0_i32_100 : i32
    %c1_i32_101 = arith.constant 1 : i32
    %144 = arith.cmpi eq, %arg1, %c1_i32_101 : i32
    %cst_102 = arith.constant 2.475000e+01 : f32
    %cst_103 = arith.constant 4.075000e+01 : f32
    %145 = arith.select %144, %cst_102, %cst_103 : f32
    %cst_104 = arith.constant 1.125000e+01 : f32
    %146 = arith.select %143, %cst_104, %145 : f32
    %147 = arith.negf %1 : vector<2x128xf32>
    %148 = math.exp %147 : vector<2x128xf32>
    %cst_105 = arith.constant 1.000000e+00 : f32
    %149 = vector.broadcast %cst_105 : f32 to vector<2x128xf32>
    %150 = arith.addf %149, %148 : vector<2x128xf32>
    %151 = arith.divf %149, %150 : vector<2x128xf32>
    %152 = arith.addf %151, %138 : vector<2x128xf32>
    %153 = arith.negf %3 : vector<2x128xf32>
    %154 = math.exp %153 : vector<2x128xf32>
    %cst_106 = arith.constant 1.000000e+00 : f32
    %155 = vector.broadcast %cst_106 : f32 to vector<2x128xf32>
    %156 = arith.addf %155, %154 : vector<2x128xf32>
    %157 = arith.divf %155, %156 : vector<2x128xf32>
    %158 = arith.addf %157, %135 : vector<2x128xf32>
    %cst_107 = arith.constant 2.000000e+01 : f32
    %159 = vector.broadcast %cst_107 : f32 to vector<2x128xf32>
    %160 = arith.minimumf %5, %159 : vector<2x128xf32>
    %161 = math.exp %160 : vector<2x128xf32>
    %162 = vector.broadcast %142 : f32 to vector<2x128xf32>
    %163 = arith.mulf %161, %162 : vector<2x128xf32>
    %cst_108 = arith.constant 2.000000e+01 : f32
    %164 = vector.broadcast %cst_108 : f32 to vector<2x128xf32>
    %165 = arith.minimumf %7, %164 : vector<2x128xf32>
    %166 = math.exp %165 : vector<2x128xf32>
    %167 = vector.broadcast %146 : f32 to vector<2x128xf32>
    %168 = arith.mulf %166, %167 : vector<2x128xf32>
    %cst_109 = arith.constant 5.000000e-01 : f32
    %169 = vector.broadcast %cst_109 : f32 to vector<2x128xf32>
    %170 = arith.mulf %169, %163 : vector<2x128xf32>
    %171 = arith.subf %152, %170 : vector<2x128xf32>
    %cst_110 = arith.constant 5.000000e-01 : f32
    %172 = vector.broadcast %cst_110 : f32 to vector<2x128xf32>
    %173 = arith.mulf %172, %163 : vector<2x128xf32>
    %174 = arith.addf %152, %173 : vector<2x128xf32>
    %cst_111 = arith.constant 5.000000e-01 : f32
    %175 = vector.broadcast %cst_111 : f32 to vector<2x128xf32>
    %176 = arith.mulf %175, %168 : vector<2x128xf32>
    %177 = arith.subf %158, %176 : vector<2x128xf32>
    %cst_112 = arith.constant 5.000000e-01 : f32
    %178 = vector.broadcast %cst_112 : f32 to vector<2x128xf32>
    %179 = arith.mulf %178, %168 : vector<2x128xf32>
    %180 = arith.addf %158, %179 : vector<2x128xf32>
    %181 = arith.mulf %163, %168 : vector<2x128xf32>
    %cst_113 = arith.constant 0.699999988 : f32
    %182 = vector.broadcast %cst_113 : f32 to vector<2x128xf32>
    %183 = arith.mulf %182, %181 : vector<2x128xf32>
    %c8_i32 = arith.constant 8 : i32
    %184 = arith.muli %arg0, %c8_i32 : i32
    %false = arith.constant false
    %185 = vector.broadcast %false : i1 to vector<2x128xi1>
    %c0_i32_114 = arith.constant 0 : i32
    %186 = arith.addi %184, %c0_i32_114 : i32
    %c0_i32_115 = arith.constant 0 : i32
    %187 = arith.addi %186, %c0_i32_115 : i32
    %188 = arith.index_cast %187 : i32 to index
    %189 = memref.load %arg2[%188] : memref<16xf32, #tpu.memory_space<smem>>
    %c2_i32 = arith.constant 2 : i32
    %190 = arith.addi %184, %c2_i32 : i32
    %c0_i32_116 = arith.constant 0 : i32
    %191 = arith.addi %190, %c0_i32_116 : i32
    %192 = arith.index_cast %191 : i32 to index
    %193 = memref.load %arg2[%192] : memref<16xf32, #tpu.memory_space<smem>>
    %c4_i32 = arith.constant 4 : i32
    %194 = arith.addi %184, %c4_i32 : i32
    %c0_i32_117 = arith.constant 0 : i32
    %195 = arith.addi %194, %c0_i32_117 : i32
    %196 = arith.index_cast %195 : i32 to index
    %197 = memref.load %arg2[%196] : memref<16xf32, #tpu.memory_space<smem>>
    %c6_i32 = arith.constant 6 : i32
    %198 = arith.addi %184, %c6_i32 : i32
    %c0_i32_118 = arith.constant 0 : i32
    %199 = arith.addi %198, %c0_i32_118 : i32
    %200 = arith.index_cast %199 : i32 to index
    %201 = memref.load %arg2[%200] : memref<16xf32, #tpu.memory_space<smem>>
    %202 = arith.subf %197, %189 : f32
    %cst_119 = arith.constant 0.699999988 : f32
    %203 = arith.mulf %cst_119, %202 : f32
    %204 = arith.subf %201, %193 : f32
    %205 = arith.mulf %203, %204 : f32
    %206 = vector.broadcast %197 : f32 to vector<2x128xf32>
    %207 = arith.minimumf %174, %206 : vector<2x128xf32>
    %208 = vector.broadcast %189 : f32 to vector<2x128xf32>
    %209 = arith.maximumf %171, %208 : vector<2x128xf32>
    %210 = arith.subf %207, %209 : vector<2x128xf32>
    %cst_120 = arith.constant 0.000000e+00 : f32
    %211 = vector.broadcast %cst_120 : f32 to vector<2x128xf32>
    %212 = arith.maximumf %210, %211 : vector<2x128xf32>
    %213 = vector.broadcast %201 : f32 to vector<2x128xf32>
    %214 = arith.minimumf %180, %213 : vector<2x128xf32>
    %215 = vector.broadcast %193 : f32 to vector<2x128xf32>
    %216 = arith.maximumf %177, %215 : vector<2x128xf32>
    %217 = arith.subf %214, %216 : vector<2x128xf32>
    %cst_121 = arith.constant 0.000000e+00 : f32
    %218 = vector.broadcast %cst_121 : f32 to vector<2x128xf32>
    %219 = arith.maximumf %217, %218 : vector<2x128xf32>
    %220 = arith.mulf %212, %219 : vector<2x128xf32>
    %cst_122 = arith.constant 1.700000e+00 : f32
    %221 = vector.broadcast %cst_122 : f32 to vector<2x128xf32>
    %222 = arith.mulf %220, %221 : vector<2x128xf32>
    %223 = vector.broadcast %205 : f32 to vector<2x128xf32>
    %224 = arith.addf %183, %223 : vector<2x128xf32>
    %225 = arith.cmpf ogt, %222, %224 : vector<2x128xf32>
    %226 = arith.ori %185, %225 : vector<2x128xi1>
    %c0_i32_123 = arith.constant 0 : i32
    %227 = arith.addi %184, %c0_i32_123 : i32
    %c1_i32_124 = arith.constant 1 : i32
    %228 = arith.addi %227, %c1_i32_124 : i32
    %229 = arith.index_cast %228 : i32 to index
    %230 = memref.load %arg2[%229] : memref<16xf32, #tpu.memory_space<smem>>
    %c2_i32_125 = arith.constant 2 : i32
    %231 = arith.addi %184, %c2_i32_125 : i32
    %c1_i32_126 = arith.constant 1 : i32
    %232 = arith.addi %231, %c1_i32_126 : i32
    %233 = arith.index_cast %232 : i32 to index
    %234 = memref.load %arg2[%233] : memref<16xf32, #tpu.memory_space<smem>>
    %c4_i32_127 = arith.constant 4 : i32
    %235 = arith.addi %184, %c4_i32_127 : i32
    %c1_i32_128 = arith.constant 1 : i32
    %236 = arith.addi %235, %c1_i32_128 : i32
    %237 = arith.index_cast %236 : i32 to index
    %238 = memref.load %arg2[%237] : memref<16xf32, #tpu.memory_space<smem>>
    %c6_i32_129 = arith.constant 6 : i32
    %239 = arith.addi %184, %c6_i32_129 : i32
    %c1_i32_130 = arith.constant 1 : i32
    %240 = arith.addi %239, %c1_i32_130 : i32
    %241 = arith.index_cast %240 : i32 to index
    %242 = memref.load %arg2[%241] : memref<16xf32, #tpu.memory_space<smem>>
    %243 = arith.subf %238, %230 : f32
    %cst_131 = arith.constant 0.699999988 : f32
    %244 = arith.mulf %cst_131, %243 : f32
    %245 = arith.subf %242, %234 : f32
    %246 = arith.mulf %244, %245 : f32
    %247 = vector.broadcast %238 : f32 to vector<2x128xf32>
    %248 = arith.minimumf %174, %247 : vector<2x128xf32>
    %249 = vector.broadcast %230 : f32 to vector<2x128xf32>
    %250 = arith.maximumf %171, %249 : vector<2x128xf32>
    %251 = arith.subf %248, %250 : vector<2x128xf32>
    %cst_132 = arith.constant 0.000000e+00 : f32
    %252 = vector.broadcast %cst_132 : f32 to vector<2x128xf32>
    %253 = arith.maximumf %251, %252 : vector<2x128xf32>
    %254 = vector.broadcast %242 : f32 to vector<2x128xf32>
    %255 = arith.minimumf %180, %254 : vector<2x128xf32>
    %256 = vector.broadcast %234 : f32 to vector<2x128xf32>
    %257 = arith.maximumf %177, %256 : vector<2x128xf32>
    %258 = arith.subf %255, %257 : vector<2x128xf32>
    %cst_133 = arith.constant 0.000000e+00 : f32
    %259 = vector.broadcast %cst_133 : f32 to vector<2x128xf32>
    %260 = arith.maximumf %258, %259 : vector<2x128xf32>
    %261 = arith.mulf %253, %260 : vector<2x128xf32>
    %cst_134 = arith.constant 1.700000e+00 : f32
    %262 = vector.broadcast %cst_134 : f32 to vector<2x128xf32>
    %263 = arith.mulf %261, %262 : vector<2x128xf32>
    %264 = vector.broadcast %246 : f32 to vector<2x128xf32>
    %265 = arith.addf %183, %264 : vector<2x128xf32>
    %266 = arith.cmpf ogt, %263, %265 : vector<2x128xf32>
    %267 = arith.ori %226, %266 : vector<2x128xi1>
    %cst_135 = arith.constant dense<true> : vector<2x128xi1>
    %268 = arith.xori %26, %cst_135 : vector<2x128xi1>
    %cst_136 = arith.constant dense<true> : vector<2x128xi1>
    %269 = arith.xori %267, %cst_136 : vector<2x128xi1>
    %270 = arith.andi %268, %269 : vector<2x128xi1>
    %271 = arith.andi %130, %270 : vector<2x128xi1>
    %272 = arith.ori %271, %26 : vector<2x128xi1>
    %273 = arith.extui %272 : vector<2x128xi1> to vector<2x128xi32>
    %274 = arith.sitofp %273 : vector<2x128xi32> to vector<2x128xf32>
    %cst_137 = arith.constant 0.000000e+00 : f32
    %275 = vector.broadcast %cst_137 : f32 to vector<2x128xf32>
    %276 = arith.maximumf %9, %275 : vector<2x128xf32>
    %277 = arith.mulf %9, %24 : vector<2x128xf32>
    %278 = arith.subf %276, %277 : vector<2x128xf32>
    %279 = math.absf %9 : vector<2x128xf32>
    %cst_138 = arith.constant 0.000000e+00 : f32
    %280 = vector.broadcast %cst_138 : f32 to vector<2x128xf32>
    %281 = arith.subf %280, %279 : vector<2x128xf32>
    %282 = math.exp %281 : vector<2x128xf32>
    %cst_139 = arith.constant 1.000000e+00 : f32
    %283 = vector.broadcast %cst_139 : f32 to vector<2x128xf32>
    %284 = arith.addf %283, %282 : vector<2x128xf32>
    %285 = math.log %284 : vector<2x128xf32>
    %286 = arith.addf %278, %285 : vector<2x128xf32>
    %287 = arith.mulf %274, %286 : vector<2x128xf32>
    %cst_140 = arith.constant dense<0.000000e+00> : vector<128xf32>
    %288 = vector.multi_reduction <add>, %45, %cst_140 [0] : vector<2x128xf32> to vector<128xf32>
    %289 = vector.shape_cast %288 : vector<128xf32> to vector<1x128xf32>
    %cst_141 = arith.constant dense<0.000000e+00> : vector<128xf32>
    %290 = vector.multi_reduction <add>, %59, %cst_141 [0] : vector<2x128xf32> to vector<128xf32>
    %291 = vector.shape_cast %290 : vector<128xf32> to vector<1x128xf32>
    %cst_142 = arith.constant dense<0.000000e+00> : vector<128xf32>
    %292 = vector.multi_reduction <add>, %63, %cst_142 [0] : vector<2x128xf32> to vector<128xf32>
    %293 = vector.shape_cast %292 : vector<128xf32> to vector<1x128xf32>
    %cst_143 = arith.constant dense<0.000000e+00> : vector<128xf32>
    %294 = vector.multi_reduction <add>, %67, %cst_143 [0] : vector<2x128xf32> to vector<128xf32>
    %295 = vector.shape_cast %294 : vector<128xf32> to vector<1x128xf32>
    %cst_144 = arith.constant dense<0.000000e+00> : vector<128xf32>
    %296 = vector.multi_reduction <add>, %121, %cst_144 [0] : vector<2x128xf32> to vector<128xf32>
    %297 = vector.shape_cast %296 : vector<128xf32> to vector<1x128xf32>
    %cst_145 = arith.constant dense<0.000000e+00> : vector<128xf32>
    %298 = vector.multi_reduction <add>, %24, %cst_145 [0] : vector<2x128xf32> to vector<128xf32>
    %299 = vector.shape_cast %298 : vector<128xf32> to vector<1x128xf32>
    %cst_146 = arith.constant dense<0.000000e+00> : vector<128xf32>
    %300 = vector.multi_reduction <add>, %287, %cst_146 [0] : vector<2x128xf32> to vector<128xf32>
    %301 = vector.shape_cast %300 : vector<128xf32> to vector<1x128xf32>
    %cst_147 = arith.constant dense<0.000000e+00> : vector<128xf32>
    %302 = vector.multi_reduction <add>, %274, %cst_147 [0] : vector<2x128xf32> to vector<128xf32>
    %303 = vector.shape_cast %302 : vector<128xf32> to vector<1x128xf32>
    %304 = tpu.concatenate %289, %291, %293, %295, %297, %299, %301, %303 in 0 : vector<1x128xf32>, vector<1x128xf32>, vector<1x128xf32>, vector<1x128xf32>, vector<1x128xf32>, vector<1x128xf32>, vector<1x128xf32>, vector<1x128xf32> -> vector<8x128xf32>
    %c0_148 = arith.constant 0 : index
    %c0_149 = arith.constant 0 : index
    %c0_150 = arith.constant 0 : index
    %c0_151 = arith.constant 0 : index
    %305 = vector.load %arg6[%c0_148, %c0_149, %c0_150, %c0_151] : memref<1x1x8x128xf32, #tpu.memory_space<vmem>>, vector<1x1x8x128xf32>
    %306 = vector.shape_cast %305 : vector<1x1x8x128xf32> to vector<8x128xf32>
    %307 = vector.shape_cast %304 : vector<8x128xf32> to vector<1x1x8x128xf32>
    tpu.vector_store %arg6[%c0_148, %c0_149, %c0_150, %c0_151], %307 {strides = array<i32>} : memref<1x1x8x128xf32, #tpu.memory_space<vmem>>, vector<1x1x8x128xf32>,
    return
  }
  func.func @transform_0(%arg0: i32, %arg1: i32, %arg2: memref<16xf32, #tpu.memory_space<smem>>) -> (i32, i32, i32, i32, i32) {
    %c0_i32 = arith.constant 0 : i32
    %c0_i32_0 = arith.constant 0 : i32
    %c0_i32_1 = arith.constant 0 : i32
    %c0_i32_2 = arith.constant 0 : i32
    return %arg0, %arg1, %c0_i32, %c0_i32_0, %c0_i32_1 : i32, i32, i32, i32, i32
  }
  func.func @transform_1(%arg0: i32, %arg1: i32, %arg2: memref<16xf32, #tpu.memory_space<smem>>) -> (i32, i32, i32, i32, i32) {
    %c0_i32 = arith.constant 0 : i32
    %c0_i32_0 = arith.constant 0 : i32
    %c0_i32_1 = arith.constant 0 : i32
    %c0_i32_2 = arith.constant 0 : i32
    return %arg0, %arg1, %c0_i32, %c0_i32_0, %c0_i32_1 : i32, i32, i32, i32, i32
  }
  func.func @transform_2(%arg0: i32, %arg1: i32, %arg2: memref<16xf32, #tpu.memory_space<smem>>) -> (i32, i32, i32, i32) {
    %c0_i32 = arith.constant 0 : i32
    %c0_i32_0 = arith.constant 0 : i32
    %c0_i32_1 = arith.constant 0 : i32
    return %arg0, %arg1, %c0_i32, %c0_i32_0 : i32, i32, i32, i32
  }
  func.func @transform_3(%arg0: i32, %arg1: i32, %arg2: memref<16xf32, #tpu.memory_space<smem>>) -> (i32, i32, i32, i32) {
    %c0_i32 = arith.constant 0 : i32
    %c0_i32_0 = arith.constant 0 : i32
    %c0_i32_1 = arith.constant 0 : i32
    return %arg0, %arg1, %c0_i32, %c0_i32_0 : i32, i32, i32, i32
  }
}

</mosaic_0001>

<llo_original>
// kernel: tpu_custom_call.1
$region0: #{tpu_custom_call.1}
  #allocation0 [shape = 'u32[]', space=smem, size = 0x4, offset = 0x4, fixed_abs, tag = 'smem constant byte address 0x4 - core index']
  #allocation1 [shape = 'u32[72,128]{1,0:T(1,128)}', space=vmem, size = 0x9000, scoped, tag = 'internal scratch']
  #allocation2 [shape = 's32[1]{0}', space=sflag, size = 0x4, scoped, tag = 'scoped memory for tpu_custom_call.1']
  #allocation3 [shape = 'u8[512]{0}', space=smem, size = 0x200, scoped, tag = 'prefetched SMEM operand 0']
  %s0 = inlined_call_operand.hbm [shape: f32[16], index: 0, kind: input, shape index: {}]
  %s1 = inlined_call_operand.hbm [shape: f32[2,3,8,2,128], index: 1, kind: input, shape index: {}]
  %s2 = inlined_call_operand.hbm [shape: bf16[2,3,8,2,128], index: 2, kind: input, shape index: {}]
  %s3 = inlined_call_operand.hbm [shape: bf16[2,3,2,128], index: 3, kind: input, shape index: {}]
  %s4 = inlined_call_operand.hbm [shape: f32[2,3,8,128], index: 4, kind: output, shape index: {}]
  %s5 = sld [smem:[#allocation0]]
  $region57: #{tpu_custom_call.1} parent=0
    _
  %s7 = ssub.s32 1, %s5
  %s8 = scalar_select 0, %s7, %s5
  %s10 = sshll.u32 %s0, 4
  %s11 = int_to_ptr.hbm [resolvable:$true] %s10
  %13 = dma.hbm_to_smem %s11, 16, [#allocation3], [#allocation2]
  %15 = dma.done [#allocation2], 16
  %16 = sfence
  $region1: #{tpu_custom_call.1} parent=0
    #allocation4 [shape = 'u8[16384]{0}', space=vmem, size = 0x4000, scoped, tag = 'input window, operand 1']
    #allocation5 [shape = 's32[2]{0}', space=sflag, size = 0x8, scoped, tag = 'scoped memory for tpu_custom_call.1']
    #allocation6 [shape = 's32[2]{0}', space=sflag, size = 0x8, scoped, tag = 'scoped memory for tpu_custom_call.1']
    #allocation7 [shape = 'u8[8192]{0}', space=vmem, size = 0x2000, scoped, tag = 'input window, operand 2']
    #allocation8 [shape = 's32[2]{0}', space=sflag, size = 0x8, scoped, tag = 'scoped memory for tpu_custom_call.1']
    #allocation9 [shape = 'u8[1024]{0}', space=vmem, size = 0x400, scoped, tag = 'input window, operand 3']
    #allocation10 [shape = 'u8[8192]{0}', space=vmem, size = 0x2000, scoped, tag = 'output window, operand 0']
    %17 = vsyncpa [#allocation5], 0
    %s18 = scalar_lea.sflag [#allocation5], 1
    %19 = vsyncpa %s18, 0
    %20 = vsyncpa [#allocation8], 0
    %s21 = scalar_lea.sflag [#allocation8], 1
    %22 = vsyncpa %s21, 0
    %23 = vsyncpa [#allocation6], 0
    %s24 = scalar_lea.sflag [#allocation6], 1
    %25 = vsyncpa %s24, 0
    loop: start=0, step=1, limit=8
    $region2: #{tpu_custom_call.1} parent=1 // loop_pre_header
      _
    $region3: #{tpu_custom_call.1} parent=1 // loop_header
      %s27 = sphi 0, %s31
      %p28 = scmp.ge.s32.totalorder %s27, 8
      %s34 = sphi 0, %s46
      %s35 = sphi 0, %s42
      %s36 = sphi 0, %s34
      %s37 = sphi 0, %s35
      %s38 = sphi 0, %s36
      %s39 = sphi 0, %s37
      %s51 = sphi 0, %s53
      %s54 = sphi 0, %s51
      %s55 = sphi 0, %s54
      %s71 = sphi 0, %s55
      %s79 = sphi 0, %s81
      %s82 = sphi 0, %s79
      %s83 = sphi 0, %s82
      %s99 = sphi 0, %s83
      %s107 = sphi 0, %s109
      %s110 = sphi 0, %s107
      %s111 = sphi 0, %s110
      %s127 = sphi 0, %s111
      %s135 = sphi 0, %s137
      %s138 = sphi 0, %s135
      %s139 = sphi 0, %s138
      %s155 = sphi 0, %s139
    $region4: #{tpu_custom_call.1} parent=1 // loop_header_branch
      %30 = sbr.rel (%p28) target = $region8
    $region5: #{tpu_custom_call.1} parent=1 // loop_body
      %s32 = ssub.s32 %s27, 1
      %s33 = ssub.s32 %s27, 2
      %s40 = sadd.s32 1, %s35
      %p41 = scmp.ge.s32.totalorder %s40, 3
      %s42 = scalar_select %p41, 0, %s40
      %s43 = sadd.s32 1, %s34
      %s44 = scalar_select %p41, %s43, %s34
      %p45 = scmp.ge.s32.totalorder %s44, 2
      %s46 = scalar_select %p45, 0, %s44
      %s47 = ssub.s32 %s34, %s46
      %s48 = ssub.s32 %s35, %s42
      %s49 = sor.u32 %s47, %s48
      %p50 = scmp.eq.s32.totalorder %s49, 0
      %s52 = sadd.s32 %s51, 1
      %s53 = scalar_select %p50, %s51, %s52
      %p56 = pneg %p50
      %p57 = scmp.eq.s32.totalorder %s27, 5
      %p58 = por %p56, %p57
      %p59 = scmp.ne.s32.totalorder %s51, %s54
      %p60 = scmp.eq.s32.totalorder %s27, 0
      %p61 = por %p59, %p60
      %p62 = scmp.ne.s32.totalorder %s51, %s54
      %p63 = scmp.eq.s32.totalorder %s32, 5
      %p64 = por %p62, %p63
      %p65 = scmp.ne.s32.totalorder %s54, %s55
      %p66 = scmp.eq.s32.totalorder %s32, 0
      %p67 = por %p65, %p66
      %p68 = scmp.ne.s32.totalorder %s54, %s55
      %p69 = scmp.eq.s32.totalorder %s33, 5
      %p70 = por %p68, %p69
      %p72 = scmp.ne.s32.totalorder %s55, %s71
      %p73 = scmp.eq.s32.totalorder %s33, 0
      %p74 = por %p72, %p73
      %s75 = ssub.s32 %s34, %s46
      %s76 = ssub.s32 %s35, %s42
      %s77 = sor.u32 %s75, %s76
      %p78 = scmp.eq.s32.totalorder %s77, 0
      %s80 = sadd.s32 %s79, 1
      %s81 = scalar_select %p78, %s79, %s80
      %p84 = pneg %p78
      %p85 = scmp.eq.s32.totalorder %s27, 5
      %p86 = por %p84, %p85
      %p87 = scmp.ne.s32.totalorder %s79, %s82
      %p88 = scmp.eq.s32.totalorder %s27, 0
      %p89 = por %p87, %p88
      %p90 = scmp.ne.s32.totalorder %s79, %s82
      %p91 = scmp.eq.s32.totalorder %s32, 5
      %p92 = por %p90, %p91
      %p93 = scmp.ne.s32.totalorder %s82, %s83
      %p94 = scmp.eq.s32.totalorder %s32, 0
      %p95 = por %p93, %p94
      %p96 = scmp.ne.s32.totalorder %s82, %s83
      %p97 = scmp.eq.s32.totalorder %s33, 5
      %p98 = por %p96, %p97
      %p100 = scmp.ne.s32.totalorder %s83, %s99
      %p101 = scmp.eq.s32.totalorder %s33, 0
      %p102 = por %p100, %p101
      %s103 = ssub.s32 %s34, %s46
      %s104 = ssub.s32 %s35, %s42
      %s105 = sor.u32 %s103, %s104
      %p106 = scmp.eq.s32.totalorder %s105, 0
      %s108 = sadd.s32 %s107, 1
      %s109 = scalar_select %p106, %s107, %s108
      %p112 = pneg %p106
      %p113 = scmp.eq.s32.totalorder %s27, 5
      %p114 = por %p112, %p113
      %p115 = scmp.ne.s32.totalorder %s107, %s110
      %p116 = scmp.eq.s32.totalorder %s27, 0
      %p117 = por %p115, %p116
      %p118 = scmp.ne.s32.totalorder %s107, %s110
      %p119 = scmp.eq.s32.totalorder %s32, 5
      %p120 = por %p118, %p119
      %p121 = scmp.ne.s32.totalorder %s110, %s111
      %p122 = scmp.eq.s32.totalorder %s32, 0
      %p123 = por %p121, %p122
      %p124 = scmp.ne.s32.totalorder %s110, %s111
      %p125 = scmp.eq.s32.totalorder %s33, 5
      %p126 = por %p124, %p125
      %p128 = scmp.ne.s32.totalorder %s111, %s127
      %p129 = scmp.eq.s32.totalorder %s33, 0
      %p130 = por %p128, %p129
      %s131 = ssub.s32 %s34, %s46
      %s132 = ssub.s32 %s35, %s42
      %s133 = sor.u32 %s131, %s132
      %p134 = scmp.eq.s32.totalorder %s133, 0
      %s136 = sadd.s32 %s135, 1
      %s137 = scalar_select %p134, %s135, %s136
      %p140 = pneg %p134
      %p141 = scmp.eq.s32.totalorder %s27, 5
      %p142 = por %p140, %p141
      %p143 = scmp.ne.s32.totalorder %s135, %s138
      %p144 = scmp.eq.s32.totalorder %s27, 0
      %p145 = por %p143, %p144
      %p146 = scmp.ne.s32.totalorder %s135, %s138
      %p147 = scmp.eq.s32.totalorder %s32, 5
      %p148 = por %p146, %p147
      %p149 = scmp.ne.s32.totalorder %s138, %s139
      %p150 = scmp.eq.s32.totalorder %s32, 0
      %p151 = por %p149, %p150
      %p152 = scmp.ne.s32.totalorder %s138, %s139
      %p153 = scmp.eq.s32.totalorder %s33, 5
      %p154 = por %p152, %p153
      %p156 = scmp.ne.s32.totalorder %s139, %s155
      %p157 = scmp.eq.s32.totalorder %s33, 0
      %p158 = por %p156, %p157
      %p159 = scmp.le.s32.totalorder 1, %s27
      %p160 = scmp.lt.s32.totalorder %s27, 7
      %p161 = pnand %p159, %p160
      %p162 = pneg %p161
      // Predicated region
      $region9: #{tpu_custom_call.1} parent=5 // pred_check
        _
      $region10: #{tpu_custom_call.1} parent=5 // pred_check_branch
        %164 = sbr.rel (%p161) target = $region12
      $region11: #{tpu_custom_call.1} parent=5 // pred_region
        %s165 = ssub.s32 %s27, 1
      $region12: #{tpu_custom_call.1} parent=5 // pred_fallthru
        _
      %p166 = scmp.lt.s32.totalorder %s27, 6
      // Predicated region
      $region13: #{tpu_custom_call.1} parent=5 // pred_check
        %p167 = pneg %p166
      $region14: #{tpu_custom_call.1} parent=5 // pred_check_branch
        %169 = sbr.rel (%p167) target = $region16
      $region15: #{tpu_custom_call.1} parent=5 // pred_region
        // Predicated region
        $region17: #{tpu_custom_call.1} parent=15 // pred_check
          %p170 = pneg %p61
        $region18: #{tpu_custom_call.1} parent=15 // pred_check_branch
          %172 = sbr.rel (%p170) target = $region20
        $region19: #{tpu_custom_call.1} parent=15 // pred_region
          %s173 = sand.u32 %s51, 1
          %s174 = scalar_lea.sflag [#allocation5], %s173
          %s175 = sand.u32 %s51, 1
          %s176 = smul.addr %s175, 16
          %s177 = scalar_lea.vmem [#allocation4], %s176
          %179 = vsyncadd %s174, 0
          %s180 = smul.addr %s35, 8
          %s181 = smul.addr %s34, 24
          %s182 = sadd.s32 %s180, %s181
          %s183 = smul.addr %s182, 2
          %s184 = scalar_lea.hbm %s1, %s183
          %s185 = sshll.u32 %s184, 4
          %s186 = int_to_ptr.hbm [resolvable:$true] %s185
          %s187 = sshll.u32 %s177, 4
          %s188 = int_to_ptr.vmem [resolvable:$true] %s187
          %193 = dma.hbm_to_vmem [thread:$0]  %s186, 256, %s188, %s174, 32, 32, 2
        $region20: #{tpu_custom_call.1} parent=15 // pred_fallthru
          _
        // Predicated region
        $region21: #{tpu_custom_call.1} parent=15 // pred_check
          %p194 = pneg %p89
        $region22: #{tpu_custom_call.1} parent=15 // pred_check_branch
          %196 = sbr.rel (%p194) target = $region24
        $region23: #{tpu_custom_call.1} parent=15 // pred_region
          %s197 = sand.u32 %s27, 1
          %s198 = scalar_lea.sflag [#allocation8], %s197
          %s199 = sand.u32 %s79, 1
          %s200 = smul.addr %s199, 8
          %s201 = scalar_lea.vmem [#allocation7], %s200
          %203 = vsyncadd %s198, 0
          %s204 = smul.addr %s35, 8
          %s205 = smul.addr %s34, 24
          %s206 = sadd.s32 %s204, %s205
          %s207 = scalar_lea.hbm %s2, %s206
          %s208 = sshll.u32 %s207, 4
          %s209 = int_to_ptr.hbm [resolvable:$true] %s208
          %s210 = sshll.u32 %s201, 4
          %s211 = int_to_ptr.vmem [resolvable:$true] %s210
          %216 = dma.hbm_to_vmem [thread:$0]  %s209, 128, %s211, %s198, 16, 16, 1
        $region24: #{tpu_custom_call.1} parent=15 // pred_fallthru
          _
        // Predicated region
        $region25: #{tpu_custom_call.1} parent=15 // pred_check
          %p217 = pneg %p117
        $region26: #{tpu_custom_call.1} parent=15 // pred_check_branch
          %219 = sbr.rel (%p217) target = $region28
        $region27: #{tpu_custom_call.1} parent=15 // pred_region
          %s220 = sand.u32 %s27, 1
          %s221 = scalar_lea.sflag [#allocation8], %s220
          %s222 = sand.u32 %s107, 1
          %s223 = scalar_lea.vmem [#allocation9], %s222
          %225 = vsyncadd %s221, 0
          %s226 = smul.addr %s34, 3
          %s227 = sadd.s32 %s35, %s226
          %s228 = scalar_lea.hbm %s3, %s227
          %s230 = sshll.u32 %s228, 4
          %s231 = int_to_ptr.hbm [resolvable:$true] %s230
          %s232 = sshll.u32 %s223, 4
          %s233 = int_to_ptr.vmem [resolvable:$true] %s232
          %235 = dma.hbm_to_vmem [thread:$0]  %s231, 16, %s233, %s221
        $region28: #{tpu_custom_call.1} parent=15 // pred_fallthru
          _
      $region16: #{tpu_custom_call.1} parent=5 // pred_fallthru
        _
      %p236 = scmp.le.s32.totalorder 1, %s27
      %p237 = scmp.lt.s32.totalorder %s27, 7
      %p238 = pnand %p236, %p237
      %p239 = pneg %p238
      // Predicated region
      $region29: #{tpu_custom_call.1} parent=5 // pred_check
        _
      $region30: #{tpu_custom_call.1} parent=5 // pred_check_branch
        %241 = sbr.rel (%p238) target = $region32
      $region31: #{tpu_custom_call.1} parent=5 // pred_region
        %s242 = ssub.s32 %s27, 1
        %s243 = sand.u32 %s54, 1
        %s244 = scalar_lea.sflag [#allocation5], %s243
        %s245 = sand.u32 %s54, 1
        %s246 = smul.addr %s245, 16
        %s247 = scalar_lea.vmem [#allocation4], %s246
        // Predicated region
        $region33: #{tpu_custom_call.1} parent=31 // pred_check
          %p248 = pneg %p67
        $region34: #{tpu_custom_call.1} parent=31 // pred_check_branch
          %250 = sbr.rel (%p248) target = $region36
        $region35: #{tpu_custom_call.1} parent=31 // pred_region
          %252 = dma.done %s244, 256
        $region36: #{tpu_custom_call.1} parent=31 // pred_fallthru
          _
        %s253 = sand.u32 %s32, 1
        %s254 = scalar_lea.sflag [#allocation8], %s253
        %s255 = sand.u32 %s82, 1
        %s256 = smul.addr %s255, 8
        %s257 = scalar_lea.vmem [#allocation7], %s256
        // Predicated region
        $region37: #{tpu_custom_call.1} parent=31 // pred_check
          %p258 = pneg %p95
        $region38: #{tpu_custom_call.1} parent=31 // pred_check_branch
          %260 = sbr.rel (%p258) target = $region40
        $region39: #{tpu_custom_call.1} parent=31 // pred_region
          %262 = dma.done %s254, 128
        $region40: #{tpu_custom_call.1} parent=31 // pred_fallthru
          _
        %s263 = sand.u32 %s32, 1
        %s264 = scalar_lea.sflag [#allocation8], %s263
        %s265 = sand.u32 %s110, 1
        %s266 = scalar_lea.vmem [#allocation9], %s265
        // Predicated region
        $region41: #{tpu_custom_call.1} parent=31 // pred_check
          %p267 = pneg %p123
        $region42: #{tpu_custom_call.1} parent=31 // pred_check_branch
          %269 = sbr.rel (%p267) target = $region44
        $region43: #{tpu_custom_call.1} parent=31 // pred_region
          %271 = dma.done %s264, 16
        $region44: #{tpu_custom_call.1} parent=31 // pred_fallthru
          _
        %s272 = sand.u32 %s54, 1
        %s273 = scalar_lea.sflag [#allocation5], %s272
        %s274 = sand.u32 %s54, 1
        %s275 = smul.addr %s274, 16
        %s276 = scalar_lea.vmem [#allocation4], %s275
        %p277 = pneg %p67
        %p278 = pneg %p64
        %s279 = sand.u32 %s32, 1
        %s280 = scalar_lea.sflag [#allocation8], %s279
        %s281 = sand.u32 %s82, 1
        %s282 = smul.addr %s281, 8
        %s283 = scalar_lea.vmem [#allocation7], %s282
        %p284 = pneg %p95
        %p285 = pneg %p92
        %s286 = sand.u32 %s32, 1
        %s287 = scalar_lea.sflag [#allocation8], %s286
        %s288 = sand.u32 %s110, 1
        %s289 = scalar_lea.vmem [#allocation9], %s288
        %p290 = pneg %p123
        %p291 = pneg %p120
        %p292 = pneg %p151
        %p293 = pneg %p148
        %s294 = sand.u32 %s138, 1
        %s295 = scalar_lea.sflag [#allocation6], %s294
        %s296 = sand.u32 %s138, 1
        %s297 = smul.addr %s296, 8
        %s298 = scalar_lea.vmem [#allocation10], %s297
        %v299 = vld [vmem:[%s247] sm:$0x3]
        %s300 = scalar_lea.vmem %s247, 2 [#allocation4]
        %v301 = vld [vmem:[%s300] sm:$0x3]
        %s302 = scalar_lea.vmem %s247, 4 [#allocation4]
        %v303 = vld [vmem:[%s302] sm:$0x3]
        %s304 = scalar_lea.vmem %s247, 6 [#allocation4]
        %v305 = vld [vmem:[%s304] sm:$0x3]
        %s306 = scalar_lea.vmem %s247, 8 [#allocation4]
        %v307 = vld [vmem:[%s306] sm:$0x3]
        %v308 = vld [vmem:[%s257] sm:$0x1]
        %v309 = vunpack.c.l.bf16 %v308
        %s310 = scalar_lea.vmem %s257, 1 [#allocation7]
        %v311 = vld [vmem:[%s310] sm:$0x1]
        %v312 = vunpack.c.l.bf16 %v311
        %s313 = scalar_lea.vmem %s257, 2 [#allocation7]
        %v314 = vld [vmem:[%s313] sm:$0x1]
        %v315 = vunpack.c.l.bf16 %v314
        %s316 = scalar_lea.vmem %s257, 3 [#allocation7]
        %v317 = vld [vmem:[%s316] sm:$0x1]
        %v318 = vunpack.c.l.bf16 %v317
        %s319 = scalar_lea.vmem %s257, 4 [#allocation7]
        %v320 = vld [vmem:[%s319] sm:$0x1]
        %v321 = vunpack.c.l.bf16 %v320
        %vm322 = vcmp.eq.f32.partialorder %v321, 1.0
        %v323 = vld [vmem:[%s266] sm:$0x1]
        %v324 = vunpack.c.l.bf16 %v323
        %v325 = vsub.f32 2.0, %v324
        %v326 = vmax.f32 %v299, 0.0
        %v327 = vmul.f32 %v299, %v309
        %v328 = vsub.f32 %v326, %v327
        %v329 = vand.u32 2147483647, %v299
        %v330 = vsub.f32 0.0, %v329
        %v331 = vmul.f32 %v330, 1.442695
        %v332 = vpow.pop %v331
        %v333 = vadd.f32 %v332, 1.0
        %v334 = vlog2.pop %v333
        %v335 = vmul.f32 %v334, 0.6931472
        %v336 = vadd.f32 %v328, %v335
        %v337 = vmul.f32 %v321, %v336
        %v338 = vmul.f32 %v337, %v325
        %v339 = vmax.f32 %v301, 0.0
        %v340 = vmul.f32 %v301, %v312
        %v341 = vsub.f32 %v339, %v340
        %v342 = vand.u32 2147483647, %v301
        %v343 = vsub.f32 0.0, %v342
        %v344 = vmul.f32 %v343, 1.442695
        %v345 = vpow.pop %v344
        %v346 = vadd.f32 %v345, 1.0
        %v347 = vlog2.pop %v346
        %v348 = vmul.f32 %v347, 0.6931472
        %v349 = vadd.f32 %v341, %v348
        %v350 = vmul.f32 %v321, %v349
        %v351 = vmul.f32 %v350, %v325
        %v352 = vsub.f32 %v315, %v303
        %v353 = vmul.f32 %v352, %v352
        %v354 = vmul.f32 %v321, %v353
        %v355 = vmul.f32 %v354, %v325
        %v356 = vsub.f32 %v318, %v305
        %v357 = vmul.f32 %v356, %v356
        %v358 = vmul.f32 %v321, %v357
        %v359 = vmul.f32 %v358, %v325
        %s360 = scalar_lea.vmem %s247, 10 [#allocation4]
        %v361 = vld [vmem:[%s360] sm:$0x3]
        %s362 = scalar_lea.vmem %s257, 5 [#allocation7]
        %v363 = vld [vmem:[%s362] sm:$0x1]
        %v364 = vunpack.c.l.bf16 %v363
        %v365 = vmax.f32 %v361, 0.0
        %v366 = vmul.f32 %v361, %v364
        %v367 = vsub.f32 %v365, %v366
        %v368 = vand.u32 2147483647, %v361
        %v369 = vsub.f32 0.0, %v368
        %v370 = vmul.f32 %v369, 1.442695
        %v371 = vpow.pop %v370
        %v372 = vadd.f32 %v371, 1.0
        %v373 = vlog2.pop %v372
        %v374 = vmul.f32 %v373, 0.6931472
        %v375 = vadd.f32 %v367, %v374
        %s376 = scalar_lea.vmem %s247, 12 [#allocation4]
        %v377 = vld [vmem:[%s376] sm:$0x3]
        %s378 = scalar_lea.vmem %s257, 6 [#allocation7]
        %v379 = vld [vmem:[%s378] sm:$0x1]
        %v380 = vunpack.c.l.bf16 %v379
        %v381 = vmax.f32 %v377, 0.0
        %v382 = vmul.f32 %v377, %v380
        %v383 = vsub.f32 %v381, %v382
        %v384 = vand.u32 2147483647, %v377
        %v385 = vsub.f32 0.0, %v384
        %v386 = vmul.f32 %v385, 1.442695
        %v387 = vpow.pop %v386
        %v388 = vadd.f32 %v387, 1.0
        %v389 = vlog2.pop %v388
        %v390 = vmul.f32 %v389, 0.6931472
        %v391 = vadd.f32 %v383, %v390
        %v392 = vadd.f32 %v375, %v391
        %s393 = scalar_lea.vmem %s247, 14 [#allocation4]
        %v394 = vld [vmem:[%s393] sm:$0x3]
        %s395 = scalar_lea.vmem %s257, 7 [#allocation7]
        %v396 = vld [vmem:[%s395] sm:$0x1]
        %v397 = vunpack.c.l.bf16 %v396
        %v398 = vmax.f32 %v394, 0.0
        %v399 = vmul.f32 %v394, %v397
        %v400 = vsub.f32 %v398, %v399
        %v401 = vand.u32 2147483647, %v394
        %v402 = vsub.f32 0.0, %v401
        %v403 = vmul.f32 %v402, 1.442695
        %v404 = vpow.pop %v403
        %v405 = vadd.f32 %v404, 1.0
        %v406 = vlog2.pop %v405
        %v407 = vmul.f32 %v406, 0.6931472
        %v408 = vadd.f32 %v400, %v407
        %v409 = vadd.f32 %v392, %v408
        %v410 = vmul.f32 %v321, %v409
        %v411 = vlaneseq
        %v412 = vshrl.u32 %v411, 7
        %v413 = vcvt.s32.f32 %v412
        %v414 = vlaneseq
        %v415 = vand.u32 %v414, 127
        %v416 = vcvt.s32.f32 %v415
        %v417 = vmul.f32 %v413, 128.0
        %v418 = vadd.f32 %v417, %v416
        %vm419 = vcmp.lt.f32.partialorder %v418, 256.0
        %v420 = vadd.f32 %v418, 0.5
        %v421 = vrcp.pop 16.0
        %v422 = vmul.f32 16.0, %v421
        %v423 = vsub.f32 1.0, %v422
        %v424 = vmul.f32 %v421, %v423
        %v425 = vadd.f32 %v421, %v424
        %vm426 = vweird.f32 %v421
        %v427 = vsel %vm426, %v421, %v425
        %v428 = vmul.f32 %v420, %v427
        %v429 = vfloor.f32 %v428
        %v430 = vmul.f32 %v429, 16.0
        %v431 = vsub.f32 %v418, %v430
        %p432 = scmp.eq.s32.totalorder %s37, 0
        %p433 = scmp.eq.s32.totalorder %s37, 1
        %s434 = scalar_select %p433, 19.5, 46.625
        %s435 = scalar_select %p432, 14.5, %s434
        %s436 = scalar_select %p433, 24.75, 40.75
        %s437 = scalar_select %p432, 11.25, %s436
        %v438 = vxor.u32 %v299, 2147483648
        %v439 = vmul.f32 %v438, 1.442695
        %v440 = vpow.pop %v439
        %v441 = vadd.f32 %v440, 1.0
        %v442 = vrcp.pop %v441
        %v443 = vmul.f32 %v441, %v442
        %v444 = vsub.f32 1.0, %v443
        %v445 = vmul.f32 %v442, %v444
        %v446 = vadd.f32 %v442, %v445
        %vm447 = vweird.f32 %v441
        %vm448 = vweird.f32 %v442
        %vm449 = vmor %vm447, %vm448
        %v450 = vsel %vm449, %v442, %v446
        %v451 = vand.u32 2147483647, %v441
        %vm452 = vcmp.eq.f32.partialorder %v451, 8.507059e+37
        %v453 = vand.u32 %v441, 2147483648
        %v454 = vor.u32 1.1754944e-38, %v453
        %v455 = vsel %vm452, %v454, %v450
        %v456 = vmul.f32 1.0, %v455
        %v457 = vadd.f32 %v456, %v431
        %v458 = vxor.u32 %v301, 2147483648
        %v459 = vmul.f32 %v458, 1.442695
        %v460 = vpow.pop %v459
        %v461 = vadd.f32 %v460, 1.0
        %v462 = vrcp.pop %v461
        %v463 = vmul.f32 %v461, %v462
        %v464 = vsub.f32 1.0, %v463
        %v465 = vmul.f32 %v462, %v464
        %v466 = vadd.f32 %v462, %v465
        %vm467 = vweird.f32 %v461
        %vm468 = vweird.f32 %v462
        %vm469 = vmor %vm467, %vm468
        %v470 = vsel %vm469, %v462, %v466
        %v471 = vand.u32 2147483647, %v461
        %vm472 = vcmp.eq.f32.partialorder %v471, 8.507059e+37
        %v473 = vand.u32 %v461, 2147483648
        %v474 = vor.u32 1.1754944e-38, %v473
        %v475 = vsel %vm472, %v474, %v470
        %v476 = vmul.f32 1.0, %v475
        %v477 = vadd.f32 %v476, %v429
        %v478 = vmin.f32 %v303, 20.0
        %v479 = vmul.f32 %v478, 1.442695
        %v480 = vpow.pop %v479
        %v481 = vstv %s435
        %v482 = vmul.f32 %v480, %v481
        %v483 = vmin.f32 %v305, 20.0
        %v484 = vmul.f32 %v483, 1.442695
        %v485 = vpow.pop %v484
        %v486 = vstv %s437
        %v487 = vmul.f32 %v485, %v486
        %v488 = vmul.f32 %v482, 0.5
        %v489 = vsub.f32 %v457, %v488
        %v490 = vadd.f32 %v457, %v488
        %v491 = vmul.f32 %v487, 0.5
        %v492 = vsub.f32 %v477, %v491
        %v493 = vadd.f32 %v477, %v491
        %v494 = vmul.f32 %v482, %v487
        %v495 = vmul.f32 %v494, 0.7
        %s496 = smul.u32 %s36, 8
        %s497 = sld [smem:[#allocation3 + %s496]]
        %s498 = sadd.s32 %s496, 2
        %s499 = sld [smem:[#allocation3 + %s498]]
        %s500 = sadd.s32 %s496, 4
        %s501 = sld [smem:[#allocation3 + %s500]]
        %s502 = sadd.s32 %s496, 6
        %s503 = sld [smem:[#allocation3 + %s502]]
        %s504 = ssub.f32 %s501, %s497
        %s505 = smul.f32 %s504, 0.7
        %s506 = ssub.f32 %s503, %s499
        %s507 = smul.f32 %s505, %s506
        %v508 = vstv %s501
        %v509 = vmin.f32 %v490, %v508
        %v510 = vstv %s497
        %v511 = vmax.f32 %v489, %v510
        %v512 = vsub.f32 %v509, %v511
        %v513 = vmax.f32 %v512, 0.0
        %v514 = vstv %s503
        %v515 = vmin.f32 %v493, %v514
        %v516 = vstv %s499
        %v517 = vmax.f32 %v492, %v516
        %v518 = vsub.f32 %v515, %v517
        %v519 = vmax.f32 %v518, 0.0
        %v520 = vmul.f32 %v513, %v519
        %v521 = vmul.f32 %v520, 1.7
        %v522 = vstv %s507
        %v523 = vadd.f32 %v495, %v522
        %vm524 = vcmp.gt.f32.partialorder %v521, %v523
        %s525 = sadd.s32 %s496, 1
        %s526 = sld [smem:[#allocation3 + %s525]]
        %s527 = sadd.s32 %s496, 3
        %s528 = sld [smem:[#allocation3 + %s527]]
        %s529 = sadd.s32 %s496, 5
        %s530 = sld [smem:[#allocation3 + %s529]]
        %s531 = sadd.s32 %s496, 7
        %s532 = sld [smem:[#allocation3 + %s531]]
        %s533 = ssub.f32 %s530, %s526
        %s534 = smul.f32 %s533, 0.7
        %s535 = ssub.f32 %s532, %s528
        %s536 = smul.f32 %s534, %s535
        %v537 = vstv %s530
        %v538 = vmin.f32 %v490, %v537
        %v539 = vstv %s526
        %v540 = vmax.f32 %v489, %v539
        %v541 = vsub.f32 %v538, %v540
        %v542 = vmax.f32 %v541, 0.0
        %v543 = vstv %s532
        %v544 = vmin.f32 %v493, %v543
        %v545 = vstv %s528
        %v546 = vmax.f32 %v492, %v545
        %v547 = vsub.f32 %v544, %v546
        %v548 = vmax.f32 %v547, 0.0
        %v549 = vmul.f32 %v542, %v548
        %v550 = vmul.f32 %v549, 1.7
        %v551 = vstv %s536
        %v552 = vadd.f32 %v495, %v551
        %vm553 = vcmp.gt.f32.partialorder %v550, %v552
        %vm554 = vmor %vm524, %vm553
        %vm555 = vmxor %vm322, 1
        %vm556 = vmxor %vm554, 1
        %vm557 = vmand %vm555, %vm556
        %vm558 = vmand %vm419, %vm557
        %vm559 = vmor %vm558, %vm322
        %v560 = vsel %vm559, 1, 0
        %v561 = vcvt.s32.f32 %v560
        %v562 = vmax.f32 %v307, 0.0
        %v563 = vmul.f32 %v307, %v321
        %v564 = vsub.f32 %v562, %v563
        %v565 = vand.u32 2147483647, %v307
        %v566 = vsub.f32 0.0, %v565
        %v567 = vmul.f32 %v566, 1.442695
        %v568 = vpow.pop %v567
        %v569 = vadd.f32 %v568, 1.0
        %v570 = vlog2.pop %v569
        %v571 = vmul.f32 %v570, 0.6931472
        %v572 = vadd.f32 %v564, %v571
        %v573 = vmul.f32 %v561, %v572
        %vm574 = vcmask 1041408
        %v575 = vsel %vm574, %v338, 0.0
        %v576 = vrot.slane %v575, 4
        %v577 = vadd.f32 %v575, %v576
        %v578 = vrot.slane %v577, 2
        %v579 = vadd.f32 %v577, %v578
        %v580 = vrot.slane %v579, 1
        %v581 = vadd.f32 %v579, %v580
        %v582 = vsel %vm574, %v351, 0.0
        %v583 = vrot.slane %v582, 4
        %v584 = vadd.f32 %v582, %v583
        %v585 = vrot.slane %v584, 2
        %v586 = vadd.f32 %v584, %v585
        %v587 = vrot.slane %v586, 1
        %v588 = vadd.f32 %v586, %v587
        %v589 = vsel %vm574, %v355, 0.0
        %v590 = vrot.slane %v589, 4
        %v591 = vadd.f32 %v589, %v590
        %v592 = vrot.slane %v591, 2
        %v593 = vadd.f32 %v591, %v592
        %v594 = vrot.slane %v593, 1
        %v595 = vadd.f32 %v593, %v594
        %v596 = vsel %vm574, %v359, 0.0
        %v597 = vrot.slane %v596, 4
        %v598 = vadd.f32 %v596, %v597
        %v599 = vrot.slane %v598, 2
        %v600 = vadd.f32 %v598, %v599
        %v601 = vrot.slane %v600, 1
        %v602 = vadd.f32 %v600, %v601
        %v603 = vsel %vm574, %v410, 0.0
        %v604 = vrot.slane %v603, 4
        %v605 = vadd.f32 %v603, %v604
        %v606 = vrot.slane %v605, 2
        %v607 = vadd.f32 %v605, %v606
        %v608 = vrot.slane %v607, 1
        %v609 = vadd.f32 %v607, %v608
        %v610 = vsel %vm574, %v321, 0.0
        %v611 = vrot.slane %v610, 4
        %v612 = vadd.f32 %v610, %v611
        %v613 = vrot.slane %v612, 2
        %v614 = vadd.f32 %v612, %v613
        %v615 = vrot.slane %v614, 1
        %v616 = vadd.f32 %v614, %v615
        %v617 = vsel %vm574, %v573, 0.0
        %v618 = vrot.slane %v617, 4
        %v619 = vadd.f32 %v617, %v618
        %v620 = vrot.slane %v619, 2
        %v621 = vadd.f32 %v619, %v620
        %v622 = vrot.slane %v621, 1
        %v623 = vadd.f32 %v621, %v622
        %v624 = vsel %vm574, %v561, 0.0
        %v625 = vrot.slane %v624, 4
        %v626 = vadd.f32 %v624, %v625
        %v627 = vrot.slane %v626, 2
        %v628 = vadd.f32 %v626, %v627
        %v629 = vrot.slane %v628, 1
        %v630 = vadd.f32 %v628, %v629
        %vm631 = vcmask 1040384
        %v632 = vsel %vm631, %v581, %v588
        %v633 = vsel %vm574, %v632, %v595
        %vm634 = vcmask 1042432
        %v635 = vsel %vm634, %v633, %v602
        %vm636 = vcmask 1043456
        %v637 = vsel %vm636, %v635, %v609
        %vm638 = vcmask 1044480
        %v639 = vsel %vm638, %v637, %v616
        %vm640 = vcmask 1045504
        %v641 = vsel %vm640, %v639, %v623
        %vm642 = vcmask 1046528
        %v643 = vsel %vm642, %v641, %v630
        %644 = vst [vmem:[%s298] sm:$0xff] %v643
        %s645 = sand.u32 %s138, 1
        %s646 = scalar_lea.sflag [#allocation6], %s645
        %s647 = sand.u32 %s138, 1
        %s648 = smul.addr %s647, 8
        %s649 = scalar_lea.vmem [#allocation10], %s648
        // Predicated region
        $region45: #{tpu_custom_call.1} parent=31 // pred_check
          %p650 = pneg %p148
        $region46: #{tpu_custom_call.1} parent=31 // pred_check_branch
          %652 = sbr.rel (%p650) target = $region48
        $region47: #{tpu_custom_call.1} parent=31 // pred_region
          %654 = vsyncadd %s646, 0
          %s655 = smul.addr %s36, 3
          %s656 = sadd.s32 %s37, %s655
          %s657 = smul.addr %s656, 8
          %s658 = scalar_lea.hbm %s4, %s657
          %s660 = sshll.u32 %s649, 4
          %s661 = int_to_ptr.vmem [resolvable:$true] %s660
          %s662 = sshll.u32 %s658, 4
          %s663 = int_to_ptr.hbm [resolvable:$true] %s662
          %665 = dma.vmem_to_hbm [thread:$0]  %s661, 128, %s663, %s646
        $region48: #{tpu_custom_call.1} parent=31 // pred_fallthru
          _
      $region32: #{tpu_custom_call.1} parent=5 // pred_fallthru
        _
      %p666 = scmp.le.s32.totalorder 2, %s27
      // Predicated region
      $region49: #{tpu_custom_call.1} parent=5 // pred_check
        %p667 = pneg %p666
      $region50: #{tpu_custom_call.1} parent=5 // pred_check_branch
        %669 = sbr.rel (%p667) target = $region52
      $region51: #{tpu_custom_call.1} parent=5 // pred_region
        %s670 = ssub.s32 %s27, 2
        // Predicated region
        $region53: #{tpu_custom_call.1} parent=51 // pred_check
          %p671 = pneg %p154
        $region54: #{tpu_custom_call.1} parent=51 // pred_check_branch
          %673 = sbr.rel (%p671) target = $region56
        $region55: #{tpu_custom_call.1} parent=51 // pred_region
          %s674 = sand.u32 %s139, 1
          %s675 = scalar_lea.sflag [#allocation6], %s674
          %s676 = sand.u32 %s139, 1
          %s677 = smul.addr %s676, 8
          %s678 = scalar_lea.vmem [#allocation10], %s677
          %680 = dma.done %s675, 128
        $region56: #{tpu_custom_call.1} parent=51 // pred_fallthru
          _
      $region52: #{tpu_custom_call.1} parent=5 // pred_fallthru
        _
    $region6: #{tpu_custom_call.1} parent=1 // loop_footer
      %s31 = sadd.s32 1, %s27
    $region7: #{tpu_custom_call.1} parent=1 // loop_footer_branch
      %26 = sbr.rel target = $region3
    $region8: #{tpu_custom_call.1} parent=1 // loop_exit
      _
    %681 = vsyncpa [#allocation5], 1
    %s682 = scalar_lea.sflag [#allocation5], 1
    %683 = vsyncpa %s682, 1
    %684 = vsyncpa [#allocation8], 1
    %s685 = scalar_lea.sflag [#allocation8], 1
    %686 = vsyncpa %s685, 1
    %687 = vsyncpa [#allocation6], 1
    %s688 = scalar_lea.sflag [#allocation6], 1
    %689 = vsyncpa %s688, 1

</llo_original>
